<compile_context>
chip_gen: v7x
topology: tpu7x:2x2x1
jax: 0.10.0
libtpu: 0.0.40
codegen_flags: <defaults>
</compile_context>

<pallas_src>
import math
import numpy as np
import jax
import jax.numpy as jnp
from jax import lax
from jax.experimental import pallas as pl
from jax.experimental.pallas import tpu as pltpu


def _round_up(x, m):
    return ((x + m - 1) // m) * m


# ----------------------------------------------------------------------------
# Smoothing filter taps (deterministic, mirrors SpectralGate.__init__)
# ----------------------------------------------------------------------------
def _smoothing_vectors(n_freq=3, n_time=5):
    fr = np.concatenate([np.linspace(0, 1, n_freq + 2)[:-1],
                         np.linspace(1, 0, n_freq + 2)])[1:-1].astype(np.float32)
    tm = np.concatenate([np.linspace(0, 1, n_time + 2)[:-1],
                         np.linspace(1, 0, n_time + 2)])[1:-1].astype(np.float32)
    filt = np.outer(fr, tm)
    filt = (filt / filt.sum()).astype(np.float32)
    # outer(fr/sum(fr), tm/sum(tm)) == filt exactly (separable, normalized)
    return (fr / fr.sum()).astype(np.float32), (tm / tm.sum()).astype(np.float32), filt


# ----------------------------------------------------------------------------
# Pallas kernel: power-domain threshold mask -> separable smoothing conv
# (shift-and-add rolls on XLU/VPU) -> gate applied to the complex STFT (re/im)
# ----------------------------------------------------------------------------
def spectral_gate_apply(thr_pow_p, st_re_p, st_im_p, fr_taps, tm_taps,
                        nf, nt, denoise_amount=1.0):
    """Inputs are zero-padded & lane/sublane dense:
         thr_pow_p : (B*nfp, 1)   f32  power-domain threshold (0 on padded rows)
         st_re_p   : (B*nfp, ntp) f32  signal STFT real part
         st_im_p   : (B*nfp, ntp) f32  signal STFT imag part
       Returns gated (re, im) with the same padded (B*nfp, ntp) shape."""
    kf, kt = len(fr_taps), len(tm_taps)
    hf, ht = kf // 2, kt // 2
    fr_l = [float(v) for v in fr_taps]
    tm_l = [float(v) for v in tm_taps]
    dn = float(denoise_amount)

    rows_total, ntp = st_re_p.shape
    nfp = _round_up(nf + hf, 8)
    B = rows_total // nfp
    assert B * nfp == rows_total
    assert nfp % 8 == 0 and ntp % 128 == 0, "tiles must be sublane/lane dense"
    # Circular-roll conv correctness: padded halo must cover the filter radius
    # so wrap-around (and cross-batch row wraps) only ever reads zero mask.
    assert nfp - nf >= hf, "freq halo too small for the roll-based conv"
    assert ntp - nt >= ht, "time halo too small for the roll-based conv"

    # VMEM sizing (honest accounting): per batch item the pipeline holds
    #   double-buffered I/O  : 2 x (re_in + im_in + re_out + im_out) = 8 tiles
    #   live temporaries     : ~6 tiles (power, mask, sm_t, sm, roll, gate)
    # of (nfp, ntp) f32 each -> ~14 tiles/item.  Target ~20 MiB so we stay well
    # under the 32 MiB scoped limit on every generation (v7x: 64 MiB physical).
    tile_bytes = 4 * nfp * ntp
    per_item_bytes = 14 * tile_bytes
    tb = max(1, min(B, (20 << 20) // max(per_item_bytes, 1)))
    if B >= 2:
        tb = min(tb, B // 2)          # >= 2 grid steps so both v7x TCs get work
    while B % tb:
        tb -= 1
    rows = tb * nfp

    def kernel(thr_ref, re_ref, im_ref, ore_ref, oim_ref):
        re = re_ref[...]                                            # (rows, ntp)
        im = im_ref[...]
        thr = thr_ref[...]                                          # (rows, 1)

        # --- threshold mask, power domain (no log10 on the signal path) -----
        # max(power,1e-8) < thr_pow  ==  10*log10(max(power,1e-8)) < thresh_db
        # Padded freq rows have thr == 0 -> mask 0; padded time cols guarded by
        # the lane iota.  Both are required so the rolls below only wrap zeros.
        power = re * re + im * im
        t_idx = lax.broadcasted_iota(jnp.int32, (rows, ntp), 1)
        mask = jnp.where((t_idx < nt) & (jnp.maximum(power, 1e-8) < thr),
                         1.0, 0.0)

        # --- separable smoothing conv: shift-and-add taps (XLU rolls + VPU) -
        sm_t = tm_l[ht] * mask                       # time taps along lanes
        for j in range(kt):
            if j == ht:
                continue
            sm_t = sm_t + tm_l[j] * pltpu.roll(mask, (ht - j) % ntp, axis=1)
        sm = fr_l[hf] * sm_t                         # freq taps along sublanes
        for i in range(kf):
            if i == hf:
                continue
            sm = sm + fr_l[i] * pltpu.roll(sm_t, (hf - i) % rows, axis=0)

        gate = 1.0 - dn * sm
        ore_ref[...] = re * gate
        oim_ref[...] = im * gate

    thr_bs = pl.BlockSpec((rows, 1), lambda b: (b, 0))
    sig_bs = pl.BlockSpec((rows, ntp), lambda b: (b, 0))

    out_re, out_im = pl.pallas_call(
        kernel,
        out_shape=(jax.ShapeDtypeStruct((rows_total, ntp), jnp.float32),
                   jax.ShapeDtypeStruct((rows_total, ntp), jnp.float32)),
        grid_spec=pltpu.PrefetchScalarGridSpec(
            num_scalar_prefetch=0,
            grid=(B // tb,),
            in_specs=[thr_bs, sig_bs, sig_bs],
            out_specs=(sig_bs, sig_bs)),
        input_output_aliases={1: 0, 2: 1},   # gated re/im overwrite the inputs
        compiler_params=pltpu.CompilerParams(
            dimension_semantics=("parallel",),
            vmem_limit_bytes=32 << 20),
    )(thr_pow_p, st_re_p, st_im_p)

    return out_re, out_im


# ----------------------------------------------------------------------------
# Plain-JAX glue: sqrt-hann STFT / ISTFT (no Pallas FFT primitive)
# ----------------------------------------------------------------------------
def sqrt_hann(win_length):
    n = np.arange(win_length)
    hann = 0.5 - 0.5 * np.cos(2.0 * np.pi * n / win_length)
    return jnp.asarray(np.sqrt(hann), dtype=jnp.float32)


def stft(x, win_length, hop_length, window):
    # x: (nb, nac, T) -> complex (nb, nac, nf, nt)
    pad = win_length // 2
    xp = jnp.pad(x, ((0, 0), (0, 0), (pad, pad)), mode="reflect")
    n_frames = 1 + (xp.shape[-1] - win_length) // hop_length
    idx = hop_length * jnp.arange(n_frames)[:, None] + jnp.arange(win_length)[None, :]
    frames = xp[..., idx]                                     # (nb, nac, nt, win)
    spec = jnp.fft.rfft(frames * window, axis=-1)             # (nb, nac, nt, nf)
    return jnp.swapaxes(spec, -1, -2)                         # (nb, nac, nf, nt)


def istft(spec, win_length, hop_length, window, length):
    frames = jnp.fft.irfft(jnp.swapaxes(spec, -1, -2), n=win_length, axis=-1)
    frames = (frames * window).astype(jnp.float32)            # (nb, nac, nt, win)
    nb, nac, nt, _ = frames.shape
    out_len = win_length + hop_length * (nt - 1)
    idx = (hop_length * jnp.arange(nt)[:, None] + jnp.arange(win_length)[None, :]).reshape(-1)

    def ola(fr):  # (nt, win) -> (out_len,)
        return jnp.zeros((out_len,), jnp.float32).at[idx].add(fr.reshape(-1))

    sig = jax.vmap(jax.vmap(ola))(frames)
    wsq = jnp.zeros((out_len,), jnp.float32).at[idx].add(
        jnp.tile(window.astype(jnp.float32) ** 2, (nt, 1)).reshape(-1))
    sig = sig / jnp.where(wsq > 1e-8, wsq, 1.0)
    pad = win_length // 2
    return sig[..., pad: pad + length]


# ----------------------------------------------------------------------------
# Full SpectralGate.forward
# ----------------------------------------------------------------------------
def spectral_gate_forward(audio, noise, n_freq=3, n_time=5, denoise_amount=1.0,
                          n_std=3.0, win_length=64, hop_length=16):
    nb, nac, T = audio.shape
    window = sqrt_hann(win_length)

    sig_spec = stft(audio, win_length, hop_length, window)    # (nb, nac, nf, nt)
    nz_spec = stft(noise, win_length, hop_length, window)
    sig_mag = jnp.abs(sig_spec).astype(jnp.float32)           # reference check only
    nz_mag = jnp.abs(nz_spec).astype(jnp.float32)

    nf, nt = sig_spec.shape[-2:]
    nt_nz = nz_mag.shape[-1]

    fr_n, tm_n, filt = _smoothing_vectors(n_freq, n_time)
    hf, ht = len(fr_n) // 2, len(tm_n) // 2

    # --- noise statistics hoisted out of the hot kernel (tiny tensor) --------
    nz_db = 20.0 * jnp.log10(jnp.maximum(nz_mag, 1e-4))       # (nb, nac, nf, nt_nz)
    mean = jnp.mean(nz_db, axis=-1, keepdims=True)
    var = jnp.sum((nz_db - mean) ** 2, axis=-1, keepdims=True) / float(max(nt_nz - 1, 1))
    thresh_db = mean + n_std * jnp.sqrt(var)                  # (nb, nac, nf, 1)
    thresh_pow = jnp.exp(thresh_db * (math.log(10.0) / 10.0)) # 10 ** (thresh_db / 10)

    # sublane/lane-dense zero padding with enough halo for the roll-based conv.
    # The pad fuses with the real/imag extraction (single materialization pass).
    nfp = _round_up(nf + hf, 8)
    ntp = _round_up(nt + ht, 128)
    B = nb * nac

    def pad3(x, f_to, t_to):
        return jnp.pad(x, ((0, 0), (0, f_to - x.shape[1]), (0, t_to - x.shape[2])))

    st_re = pad3(jnp.real(sig_spec).astype(jnp.float32).reshape(B, nf, nt),
                 nfp, ntp).reshape(B * nfp, ntp)
    st_im = pad3(jnp.imag(sig_spec).astype(jnp.float32).reshape(B, nf, nt),
                 nfp, ntp).reshape(B * nfp, ntp)
    thr_p = pad3(thresh_pow.astype(jnp.float32).reshape(B, nf, 1),
                 nfp, 1).reshape(B * nfp, 1)                  # 0 on padded rows

    out_re, out_im = spectral_gate_apply(thr_p, st_re, st_im, fr_n, tm_n,
                                         nf, nt, denoise_amount)

    out_re = out_re.reshape(B, nfp, ntp)[:, :nf, :nt]
    out_im = out_im.reshape(B, nfp, ntp)[:, :nf, :nt]
    gated = (out_re + 1j * out_im).reshape(nb, nac, nf, nt)
    denoised = istft(gated, win_length, hop_length, window, T)
    return denoised, gated, filt, sig_mag, nz_mag, sig_spec


# ----------------------------------------------------------------------------
# Pure-JAX reference for the Pallas hot path (sanity check)
# ----------------------------------------------------------------------------
def reference_gate(nz_mag, sig_mag, filt, denoise_amount, n_std):
    nz_db = 20.0 * jnp.log10(jnp.maximum(nz_mag, 1e-4))
    mean = nz_db.mean(-1, keepdims=True)
    nt_nz = nz_db.shape[-1]
    var = jnp.sum((nz_db - mean) ** 2, axis=-1, keepdims=True) / float(max(nt_nz - 1, 1))
    thresh = mean + n_std * jnp.sqrt(var)
    sig_db = 20.0 * jnp.log10(jnp.maximum(sig_mag, 1e-4))
    mask = (sig_db < thresh).astype(jnp.float32)
    nb, nac, nf, nt = mask.shape
    kf, kt = filt.shape
    sm = jax.lax.conv_general_dilated(
        mask.reshape(nb * nac, 1, nf, nt),
        jnp.asarray(filt)[None, None],
        window_strides=(1, 1),
        padding=((kf // 2, kf // 2), (kt // 2, kt // 2)),
        dimension_numbers=("NCHW", "OIHW", "NCHW"),
        precision=jax.lax.Precision.HIGHEST).reshape(nb, nac, nf, nt)
    return 1.0 - sm * float(denoise_amount)


if __name__ == "__main__":
    key = jax.random.PRNGKey(0)
    k1, k2 = jax.random.split(key, 2)

    nb, nac, T = 2, 1, 256          # win_length=64, hop=16 -> nf=33, nt=17
    t = jnp.arange(T, dtype=jnp.float32) / 8000.0
    tone = 0.5 * jnp.sin(2.0 * jnp.pi * 440.0 * t)
    audio = tone[None, None, :] + 0.05 * jax.random.normal(k1, (nb, nac, T), jnp.float32)
    noise = 0.05 * jax.random.normal(k2, (nb, nac, T), jnp.float32)

    denoise_amount, n_std = 1.0, 3.0
    denoised, gated, filt, sig_mag, nz_mag, sig_spec = spectral_gate_forward(
        audio, noise, denoise_amount=denoise_amount, n_std=n_std,
        win_length=64, hop_length=16)
    jax.block_until_ready(denoised)
    jax.block_until_ready(gated)

    # sanity check of the Pallas hot path against a pure-JAX reference
    # (mask decisions right at the threshold may flip vs the reference because
    # the kernel uses re*re+im*im instead of abs()**2; covered by the 1%
    # mismatch allowance)
    gate_ref = reference_gate(nz_mag, sig_mag, filt, denoise_amount, n_std)
    gated_ref = sig_spec * gate_ref
    diff = np.abs(np.asarray(gated) - np.asarray(gated_ref))
    mismatch_frac = float((diff > 1e-3).mean())
    if mismatch_frac > 0.01:
        raise AssertionError(f"Pallas output mismatch: max diff {diff.max()}, "
                             f"mismatch fraction {mismatch_frac}")

    print("KERNEL_OK")
</pallas_src>

<mosaic_0001>
module attributes {stable_mosaic.version = 11 : i64} {
  func.func @kernel(%arg0: i32, %arg1: memref<40x1xf32, #tpu.memory_space<vmem>>, %arg2: memref<40x128xf32, #tpu.memory_space<vmem>>, %arg3: memref<40x128xf32, #tpu.memory_space<vmem>>, %arg4: memref<40x128xf32, #tpu.memory_space<vmem>>, %arg5: memref<40x128xf32, #tpu.memory_space<vmem>>) attributes {dimension_semantics = [#tpu.dimension_semantics<parallel>], iteration_bounds = array<i64: 2>, scalar_prefetch = 0 : i64, scratch_operands = 0 : i64, tpu.core_type = #tpu.core_type<tc>, window_params = [{transform_indices = @transform_0, window_bounds = array<i64: 40, 1>}, {transform_indices = @transform_1, window_bounds = array<i64: 40, 128>}, {transform_indices = @transform_2, window_bounds = array<i64: 40, 128>}, {transform_indices = @transform_3, window_bounds = array<i64: 40, 128>}, {transform_indices = @transform_4, window_bounds = array<i64: 40, 128>}]} {
    %c0 = arith.constant 0 : index
    %c0_0 = arith.constant 0 : index
    %0 = vector.load %arg2[%c0, %c0_0] : memref<40x128xf32, #tpu.memory_space<vmem>>, vector<40x128xf32>
    %c0_1 = arith.constant 0 : index
    %c0_2 = arith.constant 0 : index
    %1 = vector.load %arg3[%c0_1, %c0_2] : memref<40x128xf32, #tpu.memory_space<vmem>>, vector<40x128xf32>
    %c0_3 = arith.constant 0 : index
    %c0_4 = arith.constant 0 : index
    %2 = vector.load %arg1[%c0_3, %c0_4] : memref<40x1xf32, #tpu.memory_space<vmem>>, vector<40x1xf32>
    %3 = arith.mulf %0, %0 : vector<40x128xf32>
    %4 = arith.mulf %1, %1 : vector<40x128xf32>
    %5 = arith.addf %3, %4 : vector<40x128xf32>
    %6 = tpu.iota {dimensions = array<i32: 1>} : vector<40x128xi32>
    %c17_i32 = arith.constant 17 : i32
    %7 = vector.broadcast %c17_i32 : i32 to vector<40x128xi32>
    %8 = arith.cmpi slt, %6, %7 : vector<40x128xi32>
    %cst = arith.constant 9.99999993E-9 : f32
    %9 = vector.broadcast %cst : f32 to vector<40x128xf32>
    %10 = arith.maximumf %5, %9 : vector<40x128xf32>
    %11 = vector.broadcast %2 : vector<40x1xf32> to vector<40x128xf32>
    %12 = arith.cmpf olt, %10, %11 : vector<40x128xf32>
    %13 = arith.andi %8, %12 : vector<40x128xi1>
    %cst_5 = arith.constant 1.000000e+00 : f32
    %cst_6 = arith.constant 0.000000e+00 : f32
    %14 = vector.broadcast %cst_5 : f32 to vector<40x128xf32>
    %15 = vector.broadcast %cst_6 : f32 to vector<40x128xf32>
    %16 = arith.select %13, %14, %15 : vector<40x128xi1>, vector<40x128xf32>
    %cst_7 = arith.constant 0.166666672 : f32
    %17 = vector.broadcast %cst_7 : f32 to vector<40x128xf32>
    %18 = arith.mulf %17, %16 : vector<40x128xf32>
    %c5_i32 = arith.constant 5 : i32
    %19 = tpu.dynamic_rotate %16 by %c5_i32 dim 1 : vector<40x128xf32>, i32 -> vector<40x128xf32>
    %cst_8 = arith.constant 0.027777778 : f32
    %20 = vector.broadcast %cst_8 : f32 to vector<40x128xf32>
    %21 = arith.mulf %20, %19 : vector<40x128xf32>
    %22 = arith.addf %18, %21 : vector<40x128xf32>
    %c4_i32 = arith.constant 4 : i32
    %23 = tpu.dynamic_rotate %16 by %c4_i32 dim 1 : vector<40x128xf32>, i32 -> vector<40x128xf32>
    %cst_9 = arith.constant 0.055555556 : f32
    %24 = vector.broadcast %cst_9 : f32 to vector<40x128xf32>
    %25 = arith.mulf %24, %23 : vector<40x128xf32>
    %26 = arith.addf %22, %25 : vector<40x128xf32>
    %c3_i32 = arith.constant 3 : i32
    %27 = tpu.dynamic_rotate %16 by %c3_i32 dim 1 : vector<40x128xf32>, i32 -> vector<40x128xf32>
    %cst_10 = arith.constant 0.0833333358 : f32
    %28 = vector.broadcast %cst_10 : f32 to vector<40x128xf32>
    %29 = arith.mulf %28, %27 : vector<40x128xf32>
    %30 = arith.addf %26, %29 : vector<40x128xf32>
    %c2_i32 = arith.constant 2 : i32
    %31 = tpu.dynamic_rotate %16 by %c2_i32 dim 1 : vector<40x128xf32>, i32 -> vector<40x128xf32>
    %cst_11 = arith.constant 0.111111112 : f32
    %32 = vector.broadcast %cst_11 : f32 to vector<40x128xf32>
    %33 = arith.mulf %32, %31 : vector<40x128xf32>
    %34 = arith.addf %30, %33 : vector<40x128xf32>
    %c1_i32 = arith.constant 1 : i32
    %35 = tpu.dynamic_rotate %16 by %c1_i32 dim 1 : vector<40x128xf32>, i32 -> vector<40x128xf32>
    %cst_12 = arith.constant 0.138888881 : f32
    %36 = vector.broadcast %cst_12 : f32 to vector<40x128xf32>
    %37 = arith.mulf %36, %35 : vector<40x128xf32>
    %38 = arith.addf %34, %37 : vector<40x128xf32>
    %c127_i32 = arith.constant 127 : i32
    %39 = tpu.dynamic_rotate %16 by %c127_i32 dim 1 : vector<40x128xf32>, i32 -> vector<40x128xf32>
    %cst_13 = arith.constant 0.138888881 : f32
    %40 = vector.broadcast %cst_13 : f32 to vector<40x128xf32>
    %41 = arith.mulf %40, %39 : vector<40x128xf32>
    %42 = arith.addf %38, %41 : vector<40x128xf32>
    %c126_i32 = arith.constant 126 : i32
    %43 = tpu.dynamic_rotate %16 by %c126_i32 dim 1 : vector<40x128xf32>, i32 -> vector<40x128xf32>
    %cst_14 = arith.constant 0.111111112 : f32
    %44 = vector.broadcast %cst_14 : f32 to vector<40x128xf32>
    %45 = arith.mulf %44, %43 : vector<40x128xf32>
    %46 = arith.addf %42, %45 : vector<40x128xf32>
    %c125_i32 = arith.constant 125 : i32
    %47 = tpu.dynamic_rotate %16 by %c125_i32 dim 1 : vector<40x128xf32>, i32 -> vector<40x128xf32>
    %cst_15 = arith.constant 0.0833333358 : f32
    %48 = vector.broadcast %cst_15 : f32 to vector<40x128xf32>
    %49 = arith.mulf %48, %47 : vector<40x128xf32>
    %50 = arith.addf %46, %49 : vector<40x128xf32>
    %c124_i32 = arith.constant 124 : i32
    %51 = tpu.dynamic_rotate %16 by %c124_i32 dim 1 : vector<40x128xf32>, i32 -> vector<40x128xf32>
    %cst_16 = arith.constant 0.055555556 : f32
    %52 = vector.broadcast %cst_16 : f32 to vector<40x128xf32>
    %53 = arith.mulf %52, %51 : vector<40x128xf32>
    %54 = arith.addf %50, %53 : vector<40x128xf32>
    %c123_i32 = arith.constant 123 : i32
    %55 = tpu.dynamic_rotate %16 by %c123_i32 dim 1 : vector<40x128xf32>, i32 -> vector<40x128xf32>
    %cst_17 = arith.constant 0.027777778 : f32
    %56 = vector.broadcast %cst_17 : f32 to vector<40x128xf32>
    %57 = arith.mulf %56, %55 : vector<40x128xf32>
    %58 = arith.addf %54, %57 : vector<40x128xf32>
    %cst_18 = arith.constant 2.500000e-01 : f32
    %59 = vector.broadcast %cst_18 : f32 to vector<40x128xf32>
    %60 = arith.mulf %59, %58 : vector<40x128xf32>
    %c3_i32_19 = arith.constant 3 : i32
    %61 = tpu.dynamic_rotate %58 by %c3_i32_19 dim 0 : vector<40x128xf32>, i32 -> vector<40x128xf32>
    %cst_20 = arith.constant 6.250000e-02 : f32
    %62 = vector.broadcast %cst_20 : f32 to vector<40x128xf32>
    %63 = arith.mulf %62, %61 : vector<40x128xf32>
    %64 = arith.addf %60, %63 : vector<40x128xf32>
    %c2_i32_21 = arith.constant 2 : i32
    %65 = tpu.dynamic_rotate %58 by %c2_i32_21 dim 0 : vector<40x128xf32>, i32 -> vector<40x128xf32>
    %cst_22 = arith.constant 1.250000e-01 : f32
    %66 = vector.broadcast %cst_22 : f32 to vector<40x128xf32>
    %67 = arith.mulf %66, %65 : vector<40x128xf32>
    %68 = arith.addf %64, %67 : vector<40x128xf32>
    %c1_i32_23 = arith.constant 1 : i32
    %69 = tpu.dynamic_rotate %58 by %c1_i32_23 dim 0 : vector<40x128xf32>, i32 -> vector<40x128xf32>
    %cst_24 = arith.constant 1.875000e-01 : f32
    %70 = vector.broadcast %cst_24 : f32 to vector<40x128xf32>
    %71 = arith.mulf %70, %69 : vector<40x128xf32>
    %72 = arith.addf %68, %71 : vector<40x128xf32>
    %c39_i32 = arith.constant 39 : i32
    %73 = tpu.dynamic_rotate %58 by %c39_i32 dim 0 : vector<40x128xf32>, i32 -> vector<40x128xf32>
    %cst_25 = arith.constant 1.875000e-01 : f32
    %74 = vector.broadcast %cst_25 : f32 to vector<40x128xf32>
    %75 = arith.mulf %74, %73 : vector<40x128xf32>
    %76 = arith.addf %72, %75 : vector<40x128xf32>
    %c38_i32 = arith.constant 38 : i32
    %77 = tpu.dynamic_rotate %58 by %c38_i32 dim 0 : vector<40x128xf32>, i32 -> vector<40x128xf32>
    %cst_26 = arith.constant 1.250000e-01 : f32
    %78 = vector.broadcast %cst_26 : f32 to vector<40x128xf32>
    %79 = arith.mulf %78, %77 : vector<40x128xf32>
    %80 = arith.addf %76, %79 : vector<40x128xf32>
    %c37_i32 = arith.constant 37 : i32
    %81 = tpu.dynamic_rotate %58 by %c37_i32 dim 0 : vector<40x128xf32>, i32 -> vector<40x128xf32>
    %cst_27 = arith.constant 6.250000e-02 : f32
    %82 = vector.broadcast %cst_27 : f32 to vector<40x128xf32>
    %83 = arith.mulf %82, %81 : vector<40x128xf32>
    %84 = arith.addf %80, %83 : vector<40x128xf32>
    %cst_28 = arith.constant 1.000000e+00 : f32
    %85 = vector.broadcast %cst_28 : f32 to vector<40x128xf32>
    %86 = arith.mulf %85, %84 : vector<40x128xf32>
    %cst_29 = arith.constant 1.000000e+00 : f32
    %87 = vector.broadcast %cst_29 : f32 to vector<40x128xf32>
    %88 = arith.subf %87, %86 : vector<40x128xf32>
    %89 = arith.mulf %0, %88 : vector<40x128xf32>
    %c0_30 = arith.constant 0 : index
    %c0_31 = arith.constant 0 : index
    %90 = vector.load %arg4[%c0_30, %c0_31] : memref<40x128xf32, #tpu.memory_space<vmem>>, vector<40x128xf32>
    tpu.vector_store %arg4[%c0_30, %c0_31], %89 {strides = array<i32>} : memref<40x128xf32, #tpu.memory_space<vmem>>, vector<40x128xf32>,
    %91 = arith.mulf %1, %88 : vector<40x128xf32>
    %c0_32 = arith.constant 0 : index
    %c0_33 = arith.constant 0 : index
    %92 = vector.load %arg5[%c0_32, %c0_33] : memref<40x128xf32, #tpu.memory_space<vmem>>, vector<40x128xf32>
    tpu.vector_store %arg5[%c0_32, %c0_33], %91 {strides = array<i32>} : memref<40x128xf32, #tpu.memory_space<vmem>>, vector<40x128xf32>,
    return
  }
  func.func @transform_0(%arg0: i32) -> (i32, i32) {
    %c0_i32 = arith.constant 0 : i32
    %c0_i32_0 = arith.constant 0 : i32
    return %arg0, %c0_i32 : i32, i32
  }
  func.func @transform_1(%arg0: i32) -> (i32, i32) {
    %c0_i32 = arith.constant 0 : i32
    %c0_i32_0 = arith.constant 0 : i32
    return %arg0, %c0_i32 : i32, i32
  }
  func.func @transform_2(%arg0: i32) -> (i32, i32) {
    %c0_i32 = arith.constant 0 : i32
    %c0_i32_0 = arith.constant 0 : i32
    return %arg0, %c0_i32 : i32, i32
  }
  func.func @transform_3(%arg0: i32) -> (i32, i32) {
    %c0_i32 = arith.constant 0 : i32
    %c0_i32_0 = arith.constant 0 : i32
    return %arg0, %c0_i32 : i32, i32
  }
  func.func @transform_4(%arg0: i32) -> (i32, i32) {
    %c0_i32 = arith.constant 0 : i32
    %c0_i32_0 = arith.constant 0 : i32
    return %arg0, %c0_i32 : i32, i32
  }
}

</mosaic_0001>

<llo_original>
// kernel: tpu_custom_call.1
$region0: #{tpu_custom_call.1}
  #allocation0 [shape = 'u32[]', space=smem, size = 0x4, offset = 0x4, fixed_abs, tag = 'smem constant byte address 0x4 - core index']
  #allocation1 [shape = 'u32[144,128]{1,0:T(1,128)}', space=vmem, size = 0x12000, scoped, tag = 'internal scratch']
  %s0 = inlined_call_operand.vmem [shape: f32[80,1], index: 0, kind: input, shape index: {}]
  %s1 = inlined_call_operand.hbm [shape: f32[80,128], index: 1, kind: input, shape index: {}, may-alias: {1,3}]
  %s2 = inlined_call_operand.hbm [shape: f32[80,128], index: 2, kind: input, shape index: {}, may-alias: {2,4}]
  %s3 = inlined_call_operand.hbm [shape: f32[80,128], index: 3, kind: output, shape index: {0}, may-alias: {1,3}]
  %s4 = inlined_call_operand.hbm [shape: f32[80,128], index: 4, kind: output, shape index: {1}, may-alias: {2,4}]
  %5 = xla_tuple %s3, %s4
  %s6 = sld [smem:[#allocation0]]
  $region61: #{tpu_custom_call.1} parent=0
    _
  %s8 = ssub.s32 1, %s6
  %s9 = scalar_select 0, %s8, %s6
  $region1: #{tpu_custom_call.1} parent=0
    #allocation2 [shape = 'u8[40960]{0}', space=vmem, size = 0xa000, scoped, tag = 'input window, operand 1']
    #allocation3 [shape = 's32[2]{0}', space=sflag, size = 0x8, scoped, tag = 'scoped memory for tpu_custom_call.1']
    #allocation4 [shape = 's32[2]{0}', space=sflag, size = 0x8, scoped, tag = 'scoped memory for tpu_custom_call.1']
    #allocation5 [shape = 'u8[40960]{0}', space=vmem, size = 0xa000, scoped, tag = 'input window, operand 2']
    #allocation6 [shape = 's32[2]{0}', space=sflag, size = 0x8, scoped, tag = 'scoped memory for tpu_custom_call.1']
    #allocation7 [shape = 'u8[40960]{0}', space=vmem, size = 0xa000, scoped, tag = 'output window, operand 0']
    #allocation8 [shape = 'u8[40960]{0}', space=vmem, size = 0xa000, scoped, tag = 'output window, operand 1']
    #allocation9 [shape = 's32[2]{0}', space=sflag, size = 0x8, scoped, tag = 'scoped memory for tpu_custom_call.1']
    %10 = vsyncpa [#allocation3], 0
    %s11 = scalar_lea.sflag [#allocation3], 1
    %12 = vsyncpa %s11, 0
    %13 = vsyncpa [#allocation6], 0
    %s14 = scalar_lea.sflag [#allocation6], 1
    %15 = vsyncpa %s14, 0
    %16 = vsyncpa [#allocation4], 0
    %s17 = scalar_lea.sflag [#allocation4], 1
    %18 = vsyncpa %s17, 0
    %19 = vsyncpa [#allocation9], 0
    %s20 = scalar_lea.sflag [#allocation9], 1
    %21 = vsyncpa %s20, 0
    loop: start=0, step=1, limit=4
    $region2: #{tpu_custom_call.1} parent=1 // loop_pre_header
      _
    $region3: #{tpu_custom_call.1} parent=1 // loop_header
      %s23 = sphi 0, %s27
      %p24 = scmp.ge.s32.totalorder %s23, 4
      %s33 = sphi 0, %s35
      %s36 = sphi 0, %s33
      %s37 = sphi 0, %s36
      %s53 = sphi 0, %s37
      %s59 = sphi 0, %s61
      %s62 = sphi 0, %s59
      %s63 = sphi 0, %s62
      %s79 = sphi 0, %s63
      %s85 = sphi 0, %s87
      %s88 = sphi 0, %s85
      %s89 = sphi 0, %s88
      %s105 = sphi 0, %s89
      %s111 = sphi 0, %s113
      %s114 = sphi 0, %s111
      %s115 = sphi 0, %s114
      %s131 = sphi 0, %s115
      %s137 = sphi 0, %s139
      %s140 = sphi 0, %s137
      %s141 = sphi 0, %s140
      %s157 = sphi 0, %s141
    $region4: #{tpu_custom_call.1} parent=1 // loop_header_branch
      %26 = sbr.rel (%p24) target = $region8
    $region5: #{tpu_custom_call.1} parent=1 // loop_body
      %s28 = ssub.s32 %s23, 1
      %s29 = ssub.s32 %s23, 2
      %s30 = sadd.s32 %s23, 1
      %s31 = ssub.s32 %s23, %s30
      %p32 = scmp.eq.s32.totalorder %s31, 0
      %s34 = sadd.s32 %s33, 1
      %s35 = scalar_select %p32, %s33, %s34
      %p38 = pneg %p32
      %p39 = scmp.eq.s32.totalorder %s23, 1
      %p40 = por %p38, %p39
      %p41 = scmp.ne.s32.totalorder %s33, %s36
      %p42 = scmp.eq.s32.totalorder %s23, 0
      %p43 = por %p41, %p42
      %p44 = scmp.ne.s32.totalorder %s33, %s36
      %p45 = scmp.eq.s32.totalorder %s28, 1
      %p46 = por %p44, %p45
      %p47 = scmp.ne.s32.totalorder %s36, %s37
      %p48 = scmp.eq.s32.totalorder %s28, 0
      %p49 = por %p47, %p48
      %p50 = scmp.ne.s32.totalorder %s36, %s37
      %p51 = scmp.eq.s32.totalorder %s29, 1
      %p52 = por %p50, %p51
      %p54 = scmp.ne.s32.totalorder %s37, %s53
      %p55 = scmp.eq.s32.totalorder %s29, 0
      %p56 = por %p54, %p55
      %s57 = ssub.s32 %s23, %s30
      %p58 = scmp.eq.s32.totalorder %s57, 0
      %s60 = sadd.s32 %s59, 1
      %s61 = scalar_select %p58, %s59, %s60
      %p64 = pneg %p58
      %p65 = scmp.eq.s32.totalorder %s23, 1
      %p66 = por %p64, %p65
      %p67 = scmp.ne.s32.totalorder %s59, %s62
      %p68 = scmp.eq.s32.totalorder %s23, 0
      %p69 = por %p67, %p68
      %p70 = scmp.ne.s32.totalorder %s59, %s62
      %p71 = scmp.eq.s32.totalorder %s28, 1
      %p72 = por %p70, %p71
      %p73 = scmp.ne.s32.totalorder %s62, %s63
      %p74 = scmp.eq.s32.totalorder %s28, 0
      %p75 = por %p73, %p74
      %p76 = scmp.ne.s32.totalorder %s62, %s63
      %p77 = scmp.eq.s32.totalorder %s29, 1
      %p78 = por %p76, %p77
      %p80 = scmp.ne.s32.totalorder %s63, %s79
      %p81 = scmp.eq.s32.totalorder %s29, 0
      %p82 = por %p80, %p81
      %s83 = ssub.s32 %s23, %s30
      %p84 = scmp.eq.s32.totalorder %s83, 0
      %s86 = sadd.s32 %s85, 1
      %s87 = scalar_select %p84, %s85, %s86
      %p90 = pneg %p84
      %p91 = scmp.eq.s32.totalorder %s23, 1
      %p92 = por %p90, %p91
      %p93 = scmp.ne.s32.totalorder %s85, %s88
      %p94 = scmp.eq.s32.totalorder %s23, 0
      %p95 = por %p93, %p94
      %p96 = scmp.ne.s32.totalorder %s85, %s88
      %p97 = scmp.eq.s32.totalorder %s28, 1
      %p98 = por %p96, %p97
      %p99 = scmp.ne.s32.totalorder %s88, %s89
      %p100 = scmp.eq.s32.totalorder %s28, 0
      %p101 = por %p99, %p100
      %p102 = scmp.ne.s32.totalorder %s88, %s89
      %p103 = scmp.eq.s32.totalorder %s29, 1
      %p104 = por %p102, %p103
      %p106 = scmp.ne.s32.totalorder %s89, %s105
      %p107 = scmp.eq.s32.totalorder %s29, 0
      %p108 = por %p106, %p107
      %s109 = ssub.s32 %s23, %s30
      %p110 = scmp.eq.s32.totalorder %s109, 0
      %s112 = sadd.s32 %s111, 1
      %s113 = scalar_select %p110, %s111, %s112
      %p116 = pneg %p110
      %p117 = scmp.eq.s32.totalorder %s23, 1
      %p118 = por %p116, %p117
      %p119 = scmp.ne.s32.totalorder %s111, %s114
      %p120 = scmp.eq.s32.totalorder %s23, 0
      %p121 = por %p119, %p120
      %p122 = scmp.ne.s32.totalorder %s111, %s114
      %p123 = scmp.eq.s32.totalorder %s28, 1
      %p124 = por %p122, %p123
      %p125 = scmp.ne.s32.totalorder %s114, %s115
      %p126 = scmp.eq.s32.totalorder %s28, 0
      %p127 = por %p125, %p126
      %p128 = scmp.ne.s32.totalorder %s114, %s115
      %p129 = scmp.eq.s32.totalorder %s29, 1
      %p130 = por %p128, %p129
      %p132 = scmp.ne.s32.totalorder %s115, %s131
      %p133 = scmp.eq.s32.totalorder %s29, 0
      %p134 = por %p132, %p133
      %s135 = ssub.s32 %s23, %s30
      %p136 = scmp.eq.s32.totalorder %s135, 0
      %s138 = sadd.s32 %s137, 1
      %s139 = scalar_select %p136, %s137, %s138
      %p142 = pneg %p136
      %p143 = scmp.eq.s32.totalorder %s23, 1
      %p144 = por %p142, %p143
      %p145 = scmp.ne.s32.totalorder %s137, %s140
      %p146 = scmp.eq.s32.totalorder %s23, 0
      %p147 = por %p145, %p146
      %p148 = scmp.ne.s32.totalorder %s137, %s140
      %p149 = scmp.eq.s32.totalorder %s28, 1
      %p150 = por %p148, %p149
      %p151 = scmp.ne.s32.totalorder %s140, %s141
      %p152 = scmp.eq.s32.totalorder %s28, 0
      %p153 = por %p151, %p152
      %p154 = scmp.ne.s32.totalorder %s140, %s141
      %p155 = scmp.eq.s32.totalorder %s29, 1
      %p156 = por %p154, %p155
      %p158 = scmp.ne.s32.totalorder %s141, %s157
      %p159 = scmp.eq.s32.totalorder %s29, 0
      %p160 = por %p158, %p159
      %p161 = scmp.le.s32.totalorder 1, %s23
      %p162 = scmp.lt.s32.totalorder %s23, 3
      %p163 = pnand %p161, %p162
      %p164 = pneg %p163
      // Predicated region
      $region9: #{tpu_custom_call.1} parent=5 // pred_check
        _
      $region10: #{tpu_custom_call.1} parent=5 // pred_check_branch
        %166 = sbr.rel (%p163) target = $region12
      $region11: #{tpu_custom_call.1} parent=5 // pred_region
        %s167 = ssub.s32 %s23, 1
      $region12: #{tpu_custom_call.1} parent=5 // pred_fallthru
        _
      %p168 = scmp.lt.s32.totalorder %s23, 2
      // Predicated region
      $region13: #{tpu_custom_call.1} parent=5 // pred_check
        %p169 = pneg %p168
      $region14: #{tpu_custom_call.1} parent=5 // pred_check_branch
        %171 = sbr.rel (%p169) target = $region16
      $region15: #{tpu_custom_call.1} parent=5 // pred_region
        // Predicated region
        $region17: #{tpu_custom_call.1} parent=15 // pred_check
          %p172 = pneg %p43
        $region18: #{tpu_custom_call.1} parent=15 // pred_check_branch
          %174 = sbr.rel (%p172) target = $region20
        $region19: #{tpu_custom_call.1} parent=15 // pred_region
          %s175 = smul.u32 5, %s23
          %p176 = scmp.lt.s32.totalorder %s175, 9
          %s177 = scalar_select %p176, %s175, 9
          %s178 = smul.addr %s177, 8
          %s179 = scalar_lea.vmem %s0, %s178
          %s180 = smul.u32 5, %s23
        $region20: #{tpu_custom_call.1} parent=15 // pred_fallthru
          _
        // Predicated region
        $region21: #{tpu_custom_call.1} parent=15 // pred_check
          %p181 = pneg %p69
        $region22: #{tpu_custom_call.1} parent=15 // pred_check_branch
          %183 = sbr.rel (%p181) target = $region24
        $region23: #{tpu_custom_call.1} parent=15 // pred_region
          %s184 = sand.u32 %s59, 1
          %s185 = scalar_lea.sflag [#allocation3], %s184
          %s186 = sand.u32 %s59, 1
          %s187 = smul.addr %s186, 40
          %s188 = scalar_lea.vmem [#allocation2], %s187
          %s189 = smul.u32 5, %s23
          %s191 = ssub.s32 640, 640
          %192 = vsyncadd %s185, %s191
          %s193 = smul.addr %s189, 128
          %s194 = scalar_lea.hbm %s1, %s193
          %s195 = sshll.u32 %s188, 4
          %s196 = int_to_ptr.vmem [resolvable:$true] %s195
          %201 = dma.hbm_to_vmem [thread:$0]  %s194, 640, %s196, %s185, 128, 128, 8
        $region24: #{tpu_custom_call.1} parent=15 // pred_fallthru
          _
        // Predicated region
        $region25: #{tpu_custom_call.1} parent=15 // pred_check
          %p202 = pneg %p95
        $region26: #{tpu_custom_call.1} parent=15 // pred_check_branch
          %204 = sbr.rel (%p202) target = $region28
        $region27: #{tpu_custom_call.1} parent=15 // pred_region
          %s205 = sand.u32 %s85, 1
          %s206 = scalar_lea.sflag [#allocation6], %s205
          %s207 = sand.u32 %s85, 1
          %s208 = smul.addr %s207, 40
          %s209 = scalar_lea.vmem [#allocation5], %s208
          %s210 = smul.u32 5, %s23
          %s212 = ssub.s32 640, 640
          %213 = vsyncadd %s206, %s212
          %s214 = smul.addr %s210, 128
          %s215 = scalar_lea.hbm %s2, %s214
          %s216 = sshll.u32 %s209, 4
          %s217 = int_to_ptr.vmem [resolvable:$true] %s216
          %222 = dma.hbm_to_vmem [thread:$0]  %s215, 640, %s217, %s206, 128, 128, 8
        $region28: #{tpu_custom_call.1} parent=15 // pred_fallthru
          _
      $region16: #{tpu_custom_call.1} parent=5 // pred_fallthru
        _
      %p223 = scmp.le.s32.totalorder 1, %s23
      %p224 = scmp.lt.s32.totalorder %s23, 3
      %p225 = pnand %p223, %p224
      %p226 = pneg %p225
      // Predicated region
      $region29: #{tpu_custom_call.1} parent=5 // pred_check
        _
      $region30: #{tpu_custom_call.1} parent=5 // pred_check_branch
        %228 = sbr.rel (%p225) target = $region32
      $region31: #{tpu_custom_call.1} parent=5 // pred_region
        %s229 = ssub.s32 %s23, 1
        %s230 = sand.u32 %s62, 1
        %s231 = scalar_lea.sflag [#allocation3], %s230
        %s232 = sand.u32 %s62, 1
        %s233 = smul.addr %s232, 40
        %s234 = scalar_lea.vmem [#allocation2], %s233
        // Predicated region
        $region33: #{tpu_custom_call.1} parent=31 // pred_check
          %p235 = pneg %p75
        $region34: #{tpu_custom_call.1} parent=31 // pred_check_branch
          %237 = sbr.rel (%p235) target = $region36
        $region35: #{tpu_custom_call.1} parent=31 // pred_region
          %238 = dma.done %s231, 640
        $region36: #{tpu_custom_call.1} parent=31 // pred_fallthru
          _
        %s239 = sand.u32 %s88, 1
        %s240 = scalar_lea.sflag [#allocation6], %s239
        %s241 = sand.u32 %s88, 1
        %s242 = smul.addr %s241, 40
        %s243 = scalar_lea.vmem [#allocation5], %s242
        // Predicated region
        $region37: #{tpu_custom_call.1} parent=31 // pred_check
          %p244 = pneg %p101
        $region38: #{tpu_custom_call.1} parent=31 // pred_check_branch
          %246 = sbr.rel (%p244) target = $region40
        $region39: #{tpu_custom_call.1} parent=31 // pred_region
          %247 = dma.done %s240, 640
        $region40: #{tpu_custom_call.1} parent=31 // pred_fallthru
          _
        %s248 = smul.u32 5, %s28
        %p249 = scmp.lt.s32.totalorder %s248, 9
        %s250 = scalar_select %p249, %s248, 9
        %s251 = smul.addr %s250, 8
        %s252 = scalar_lea.vmem %s0, %s251
        %p253 = pneg %p49
        %p254 = pneg %p46
        %s255 = sand.u32 %s62, 1
        %s256 = scalar_lea.sflag [#allocation3], %s255
        %s257 = sand.u32 %s62, 1
        %s258 = smul.addr %s257, 40
        %s259 = scalar_lea.vmem [#allocation2], %s258
        %p260 = pneg %p75
        %p261 = pneg %p72
        %s262 = sand.u32 %s88, 1
        %s263 = scalar_lea.sflag [#allocation6], %s262
        %s264 = sand.u32 %s88, 1
        %s265 = smul.addr %s264, 40
        %s266 = scalar_lea.vmem [#allocation5], %s265
        %p267 = pneg %p101
        %p268 = pneg %p98
        %p269 = pneg %p127
        %p270 = pneg %p124
        %s271 = sand.u32 %s114, 1
        %s272 = scalar_lea.sflag [#allocation4], %s271
        %s273 = sand.u32 %s114, 1
        %s274 = smul.addr %s273, 40
        %s275 = scalar_lea.vmem [#allocation7], %s274
        %p276 = pneg %p153
        %p277 = pneg %p150
        %s278 = sand.u32 %s140, 1
        %s279 = scalar_lea.sflag [#allocation9], %s278
        %s280 = sand.u32 %s140, 1
        %s281 = smul.addr %s280, 40
        %s282 = scalar_lea.vmem [#allocation8], %s281
        %s283 = smul.u32 5, %s28
        %p284 = scmp.lt.s32.totalorder %s283, 9
        %s285 = scalar_select %p284, %s283, 9
        %s286 = smul.addr %s285, 8
        %s287 = scalar_lea.vmem %s0, %s286
        %s288 = smul.u32 5, %s28
        %s289 = smul.u32 5, %s28
        %s290 = smul.u32 5, %s28
        %s291 = smul.u32 5, %s28
        %s292 = smul.u32 5, %s28
        %v293 = vld [vmem:[%s234] sm:$0xff]
        %v294 = vld [vmem:[%s234 + $0x8] sm:$0xff]
        %v295 = vld [vmem:[%s234 + $0x10] sm:$0xff]
        %v296 = vld [vmem:[%s234 + $0x18] sm:$0xff]
        %v297 = vld [vmem:[%s234 + $0x20] sm:$0xff]
        %v298 = vld [vmem:[%s243] sm:$0xff]
        %v299 = vld [vmem:[%s243 + $0x8] sm:$0xff]
        %v300 = vld [vmem:[%s243 + $0x10] sm:$0xff]
        %v301 = vld [vmem:[%s243 + $0x18] sm:$0xff]
        %v302 = vld [vmem:[%s243 + $0x20] sm:$0xff]
        %v303 = vld [vmem:[%s287] sm:$0xff]
        %v304 = vld [vmem:[%s287 + $0x8] sm:$0xff]
        %v305 = vld [vmem:[%s287 + $0x10] sm:$0xff]
        %v306 = vld [vmem:[%s287 + $0x18] sm:$0xff]
        %v307 = vld [vmem:[%s287 + $0x20] sm:$0xff]
        %v308 = vmul.f32 %v293, %v293
        %v309 = vmul.f32 %v294, %v294
        %v310 = vmul.f32 %v295, %v295
        %v311 = vmul.f32 %v296, %v296
        %v312 = vmul.f32 %v297, %v297
        %v313 = vmul.f32 %v298, %v298
        %v314 = vmul.f32 %v299, %v299
        %v315 = vmul.f32 %v300, %v300
        %v316 = vmul.f32 %v301, %v301
        %v317 = vmul.f32 %v302, %v302
        %v318 = vadd.f32 %v308, %v313
        %v319 = vadd.f32 %v309, %v314
        %v320 = vadd.f32 %v310, %v315
        %v321 = vadd.f32 %v311, %v316
        %v322 = vadd.f32 %v312, %v317
        %v323 = vlaneseq
        %v324 = vand.u32 %v323, 127
        %vm325 = vcmp.lt.s32.totalorder %v324, 17
        %v326 = vmax.f32 %v318, 1e-08
        %v327 = vmax.f32 %v319, 1e-08
        %v328 = vmax.f32 %v320, 1e-08
        %v329 = vmax.f32 %v321, 1e-08
        %v330 = vmax.f32 %v322, 1e-08
        %332 = vset.pattern.permute.xlu0 0
        %333 = vperm.xlu0 %332, %v303
        %v334 = vpop.permute.xlu0 %333
        %337 = vset.pattern.permute.xlu0 0
        %338 = vperm.xlu0 %337, %v304
        %v339 = vpop.permute.xlu0 %338
        %342 = vset.pattern.permute.xlu0 0
        %343 = vperm.xlu0 %342, %v305
        %v344 = vpop.permute.xlu0 %343
        %347 = vset.pattern.permute.xlu0 0
        %348 = vperm.xlu0 %347, %v306
        %v349 = vpop.permute.xlu0 %348
        %352 = vset.pattern.permute.xlu0 0
        %353 = vperm.xlu0 %352, %v307
        %v354 = vpop.permute.xlu0 %353
        %vm356 = vcmp.lt.f32.partialorder %v326, %v334
        %vm357 = vcmp.lt.f32.partialorder %v327, %v339
        %vm358 = vcmp.lt.f32.partialorder %v328, %v344
        %vm359 = vcmp.lt.f32.partialorder %v329, %v349
        %vm360 = vcmp.lt.f32.partialorder %v330, %v354
        %vm361 = vmand %vm325, %vm356
        %vm362 = vmand %vm325, %vm357
        %vm363 = vmand %vm325, %vm358
        %vm364 = vmand %vm325, %vm359
        %vm365 = vmand %vm325, %vm360
        %v366 = vsel %vm361, 1.0, 0.0
        %v367 = vsel %vm362, 1.0, 0.0
        %v368 = vsel %vm363, 1.0, 0.0
        %v369 = vsel %vm364, 1.0, 0.0
        %v370 = vsel %vm365, 1.0, 0.0
        %v371 = vmul.f32 %v366, 0.16666667
        %v372 = vmul.f32 %v367, 0.16666667
        %v373 = vmul.f32 %v368, 0.16666667
        %v374 = vmul.f32 %v369, 0.16666667
        %v375 = vmul.f32 %v370, 0.16666667
        %376 = vrot.lane.b32.xlu0 %v366, 5
        %v377 = vpop.permute.xlu0 %376
        %378 = vrot.lane.b32.xlu0 %v367, 5
        %v379 = vpop.permute.xlu0 %378
        %380 = vrot.lane.b32.xlu0 %v368, 5
        %v381 = vpop.permute.xlu0 %380
        %382 = vrot.lane.b32.xlu0 %v369, 5
        %v383 = vpop.permute.xlu0 %382
        %384 = vrot.lane.b32.xlu0 %v370, 5
        %v385 = vpop.permute.xlu0 %384
        %v386 = vmul.f32 %v377, 0.027777778
        %v387 = vmul.f32 %v379, 0.027777778
        %v388 = vmul.f32 %v381, 0.027777778
        %v389 = vmul.f32 %v383, 0.027777778
        %v390 = vmul.f32 %v385, 0.027777778
        %v391 = vadd.f32 %v371, %v386
        %v392 = vadd.f32 %v372, %v387
        %v393 = vadd.f32 %v373, %v388
        %v394 = vadd.f32 %v374, %v389
        %v395 = vadd.f32 %v375, %v390
        %396 = vrot.lane.b32.xlu0 %v366, 4
        %v397 = vpop.permute.xlu0 %396
        %398 = vrot.lane.b32.xlu0 %v367, 4
        %v399 = vpop.permute.xlu0 %398
        %400 = vrot.lane.b32.xlu0 %v368, 4
        %v401 = vpop.permute.xlu0 %400
        %402 = vrot.lane.b32.xlu0 %v369, 4
        %v403 = vpop.permute.xlu0 %402
        %404 = vrot.lane.b32.xlu0 %v370, 4
        %v405 = vpop.permute.xlu0 %404
        %v406 = vmul.f32 %v397, 0.055555556
        %v407 = vmul.f32 %v399, 0.055555556
        %v408 = vmul.f32 %v401, 0.055555556
        %v409 = vmul.f32 %v403, 0.055555556
        %v410 = vmul.f32 %v405, 0.055555556
        %v411 = vadd.f32 %v391, %v406
        %v412 = vadd.f32 %v392, %v407
        %v413 = vadd.f32 %v393, %v408
        %v414 = vadd.f32 %v394, %v409
        %v415 = vadd.f32 %v395, %v410
        %416 = vrot.lane.b32.xlu0 %v366, 3
        %v417 = vpop.permute.xlu0 %416
        %418 = vrot.lane.b32.xlu0 %v367, 3
        %v419 = vpop.permute.xlu0 %418
        %420 = vrot.lane.b32.xlu0 %v368, 3
        %v421 = vpop.permute.xlu0 %420
        %422 = vrot.lane.b32.xlu0 %v369, 3
        %v423 = vpop.permute.xlu0 %422
        %424 = vrot.lane.b32.xlu0 %v370, 3
        %v425 = vpop.permute.xlu0 %424
        %v426 = vmul.f32 %v417, 0.083333336
        %v427 = vmul.f32 %v419, 0.083333336
        %v428 = vmul.f32 %v421, 0.083333336
        %v429 = vmul.f32 %v423, 0.083333336
        %v430 = vmul.f32 %v425, 0.083333336
        %v431 = vadd.f32 %v411, %v426
        %v432 = vadd.f32 %v412, %v427
        %v433 = vadd.f32 %v413, %v428
        %v434 = vadd.f32 %v414, %v429
        %v435 = vadd.f32 %v415, %v430
        %436 = vrot.lane.b32.xlu0 %v366, 2
        %v437 = vpop.permute.xlu0 %436
        %438 = vrot.lane.b32.xlu0 %v367, 2
        %v439 = vpop.permute.xlu0 %438
        %440 = vrot.lane.b32.xlu0 %v368, 2
        %v441 = vpop.permute.xlu0 %440
        %442 = vrot.lane.b32.xlu0 %v369, 2
        %v443 = vpop.permute.xlu0 %442
        %444 = vrot.lane.b32.xlu0 %v370, 2
        %v445 = vpop.permute.xlu0 %444
        %v446 = vmul.f32 %v437, 0.11111111
        %v447 = vmul.f32 %v439, 0.11111111
        %v448 = vmul.f32 %v441, 0.11111111
        %v449 = vmul.f32 %v443, 0.11111111
        %v450 = vmul.f32 %v445, 0.11111111
        %v451 = vadd.f32 %v431, %v446
        %v452 = vadd.f32 %v432, %v447
        %v453 = vadd.f32 %v433, %v448
        %v454 = vadd.f32 %v434, %v449
        %v455 = vadd.f32 %v435, %v450
        %456 = vrot.lane.b32.xlu0 %v366, 1
        %v457 = vpop.permute.xlu0 %456
        %458 = vrot.lane.b32.xlu0 %v367, 1
        %v459 = vpop.permute.xlu0 %458
        %460 = vrot.lane.b32.xlu0 %v368, 1
        %v461 = vpop.permute.xlu0 %460
        %462 = vrot.lane.b32.xlu0 %v369, 1
        %v463 = vpop.permute.xlu0 %462
        %464 = vrot.lane.b32.xlu0 %v370, 1
        %v465 = vpop.permute.xlu0 %464
        %v466 = vmul.f32 %v457, 0.13888888
        %v467 = vmul.f32 %v459, 0.13888888
        %v468 = vmul.f32 %v461, 0.13888888
        %v469 = vmul.f32 %v463, 0.13888888
        %v470 = vmul.f32 %v465, 0.13888888
        %v471 = vadd.f32 %v451, %v466
        %v472 = vadd.f32 %v452, %v467
        %v473 = vadd.f32 %v453, %v468
        %v474 = vadd.f32 %v454, %v469
        %v475 = vadd.f32 %v455, %v470
        %476 = vrot.lane.b32.xlu0 %v366, 127
        %v477 = vpop.permute.xlu0 %476
        %478 = vrot.lane.b32.xlu0 %v367, 127
        %v479 = vpop.permute.xlu0 %478
        %480 = vrot.lane.b32.xlu0 %v368, 127
        %v481 = vpop.permute.xlu0 %480
        %482 = vrot.lane.b32.xlu0 %v369, 127
        %v483 = vpop.permute.xlu0 %482
        %484 = vrot.lane.b32.xlu0 %v370, 127
        %v485 = vpop.permute.xlu0 %484
        %v486 = vmul.f32 %v477, 0.13888888
        %v487 = vmul.f32 %v479, 0.13888888
        %v488 = vmul.f32 %v481, 0.13888888
        %v489 = vmul.f32 %v483, 0.13888888
        %v490 = vmul.f32 %v485, 0.13888888
        %v491 = vadd.f32 %v471, %v486
        %v492 = vadd.f32 %v472, %v487
        %v493 = vadd.f32 %v473, %v488
        %v494 = vadd.f32 %v474, %v489
        %v495 = vadd.f32 %v475, %v490
        %496 = vrot.lane.b32.xlu0 %v366, 126
        %v497 = vpop.permute.xlu0 %496
        %498 = vrot.lane.b32.xlu0 %v367, 126
        %v499 = vpop.permute.xlu0 %498
        %500 = vrot.lane.b32.xlu0 %v368, 126
        %v501 = vpop.permute.xlu0 %500
        %502 = vrot.lane.b32.xlu0 %v369, 126
        %v503 = vpop.permute.xlu0 %502
        %504 = vrot.lane.b32.xlu0 %v370, 126
        %v505 = vpop.permute.xlu0 %504
        %v506 = vmul.f32 %v497, 0.11111111
        %v507 = vmul.f32 %v499, 0.11111111
        %v508 = vmul.f32 %v501, 0.11111111
        %v509 = vmul.f32 %v503, 0.11111111
        %v510 = vmul.f32 %v505, 0.11111111
        %v511 = vadd.f32 %v491, %v506
        %v512 = vadd.f32 %v492, %v507
        %v513 = vadd.f32 %v493, %v508
        %v514 = vadd.f32 %v494, %v509
        %v515 = vadd.f32 %v495, %v510
        %516 = vrot.lane.b32.xlu0 %v366, 125
        %v517 = vpop.permute.xlu0 %516
        %518 = vrot.lane.b32.xlu0 %v367, 125
        %v519 = vpop.permute.xlu0 %518
        %520 = vrot.lane.b32.xlu0 %v368, 125
        %v521 = vpop.permute.xlu0 %520
        %522 = vrot.lane.b32.xlu0 %v369, 125
        %v523 = vpop.permute.xlu0 %522
        %524 = vrot.lane.b32.xlu0 %v370, 125
        %v525 = vpop.permute.xlu0 %524
        %v526 = vmul.f32 %v517, 0.083333336
        %v527 = vmul.f32 %v519, 0.083333336
        %v528 = vmul.f32 %v521, 0.083333336
        %v529 = vmul.f32 %v523, 0.083333336
        %v530 = vmul.f32 %v525, 0.083333336
        %v531 = vadd.f32 %v511, %v526
        %v532 = vadd.f32 %v512, %v527
        %v533 = vadd.f32 %v513, %v528
        %v534 = vadd.f32 %v514, %v529
        %v535 = vadd.f32 %v515, %v530
        %536 = vrot.lane.b32.xlu0 %v366, 124
        %v537 = vpop.permute.xlu0 %536
        %538 = vrot.lane.b32.xlu0 %v367, 124
        %v539 = vpop.permute.xlu0 %538
        %540 = vrot.lane.b32.xlu0 %v368, 124
        %v541 = vpop.permute.xlu0 %540
        %542 = vrot.lane.b32.xlu0 %v369, 124
        %v543 = vpop.permute.xlu0 %542
        %544 = vrot.lane.b32.xlu0 %v370, 124
        %v545 = vpop.permute.xlu0 %544
        %v546 = vmul.f32 %v537, 0.055555556
        %v547 = vmul.f32 %v539, 0.055555556
        %v548 = vmul.f32 %v541, 0.055555556
        %v549 = vmul.f32 %v543, 0.055555556
        %v550 = vmul.f32 %v545, 0.055555556
        %v551 = vadd.f32 %v531, %v546
        %v552 = vadd.f32 %v532, %v547
        %v553 = vadd.f32 %v533, %v548
        %v554 = vadd.f32 %v534, %v549
        %v555 = vadd.f32 %v535, %v550
        %556 = vrot.lane.b32.xlu0 %v366, 123
        %v557 = vpop.permute.xlu0 %556
        %558 = vrot.lane.b32.xlu0 %v367, 123
        %v559 = vpop.permute.xlu0 %558
        %560 = vrot.lane.b32.xlu0 %v368, 123
        %v561 = vpop.permute.xlu0 %560
        %562 = vrot.lane.b32.xlu0 %v369, 123
        %v563 = vpop.permute.xlu0 %562
        %564 = vrot.lane.b32.xlu0 %v370, 123
        %v565 = vpop.permute.xlu0 %564
        %v566 = vmul.f32 %v557, 0.027777778
        %v567 = vmul.f32 %v559, 0.027777778
        %v568 = vmul.f32 %v561, 0.027777778
        %v569 = vmul.f32 %v563, 0.027777778
        %v570 = vmul.f32 %v565, 0.027777778
        %v571 = vadd.f32 %v551, %v566
        %v572 = vadd.f32 %v552, %v567
        %v573 = vadd.f32 %v553, %v568
        %v574 = vadd.f32 %v554, %v569
        %v575 = vadd.f32 %v555, %v570
        %v576 = vmul.f32 %v571, 0.25
        %v577 = vmul.f32 %v572, 0.25
        %v578 = vmul.f32 %v573, 0.25
        %v579 = vmul.f32 %v574, 0.25
        %v580 = vmul.f32 %v575, 0.25
        %v581 = vrot.slane %v571, 5
        %v582 = vrot.slane %v572, 5
        %v583 = vrot.slane %v573, 5
        %v584 = vrot.slane %v574, 5
        %v585 = vrot.slane %v575, 5
        %v586 = vlaneseq
        %v587 = vshrl.u32 %v586, 7
        %vm588 = vcmp.lt.s32.totalorder %v587, 3
        %v589 = vsel %vm588, %v584, %v585
        %v590 = vsel %vm588, %v583, %v584
        %v591 = vsel %vm588, %v582, %v583
        %v592 = vsel %vm588, %v581, %v582
        %v593 = vsel %vm588, %v585, %v581
        %v594 = vmul.f32 %v593, 0.0625
        %v595 = vmul.f32 %v592, 0.0625
        %v596 = vmul.f32 %v591, 0.0625
        %v597 = vmul.f32 %v590, 0.0625
        %v598 = vmul.f32 %v589, 0.0625
        %v599 = vadd.f32 %v576, %v594
        %v600 = vadd.f32 %v577, %v595
        %v601 = vadd.f32 %v578, %v596
        %v602 = vadd.f32 %v579, %v597
        %v603 = vadd.f32 %v580, %v598
        %v604 = vrot.slane %v571, 6
        %v605 = vrot.slane %v572, 6
        %v606 = vrot.slane %v573, 6
        %v607 = vrot.slane %v574, 6
        %v608 = vrot.slane %v575, 6
        %vm609 = vcmp.lt.s32.totalorder %v587, 2
        %v610 = vsel %vm609, %v607, %v608
        %v611 = vsel %vm609, %v606, %v607
        %v612 = vsel %vm609, %v605, %v606
        %v613 = vsel %vm609, %v604, %v605
        %v614 = vsel %vm609, %v608, %v604
        %v615 = vmul.f32 %v614, 0.125
        %v616 = vmul.f32 %v613, 0.125
        %v617 = vmul.f32 %v612, 0.125
        %v618 = vmul.f32 %v611, 0.125
        %v619 = vmul.f32 %v610, 0.125
        %v620 = vadd.f32 %v599, %v615
        %v621 = vadd.f32 %v600, %v616
        %v622 = vadd.f32 %v601, %v617
        %v623 = vadd.f32 %v602, %v618
        %v624 = vadd.f32 %v603, %v619
        %v625 = vrot.slane %v571, 7
        %v626 = vrot.slane %v572, 7
        %v627 = vrot.slane %v573, 7
        %v628 = vrot.slane %v574, 7
        %v629 = vrot.slane %v575, 7
        %vm630 = vcmp.lt.s32.totalorder %v587, 1
        %v631 = vsel %vm630, %v628, %v629
        %v632 = vsel %vm630, %v627, %v628
        %v633 = vsel %vm630, %v626, %v627
        %v634 = vsel %vm630, %v625, %v626
        %v635 = vsel %vm630, %v629, %v625
        %v636 = vmul.f32 %v635, 0.1875
        %v637 = vmul.f32 %v634, 0.1875
        %v638 = vmul.f32 %v633, 0.1875
        %v639 = vmul.f32 %v632, 0.1875
        %v640 = vmul.f32 %v631, 0.1875
        %v641 = vadd.f32 %v620, %v636
        %v642 = vadd.f32 %v621, %v637
        %v643 = vadd.f32 %v622, %v638
        %v644 = vadd.f32 %v623, %v639
        %v645 = vadd.f32 %v624, %v640
        %v646 = vrot.slane %v571, 1
        %v647 = vrot.slane %v572, 1
        %v648 = vrot.slane %v573, 1
        %v649 = vrot.slane %v574, 1
        %v650 = vrot.slane %v575, 1
        %vm651 = vcmp.lt.s32.totalorder %v587, 7
        %v652 = vsel %vm651, %v649, %v650
        %v653 = vsel %vm651, %v648, %v649
        %v654 = vsel %vm651, %v647, %v648
        %v655 = vsel %vm651, %v646, %v647
        %v656 = vsel %vm651, %v650, %v646
        %v657 = vmul.f32 %v655, 0.1875
        %v658 = vmul.f32 %v654, 0.1875
        %v659 = vmul.f32 %v653, 0.1875
        %v660 = vmul.f32 %v652, 0.1875
        %v661 = vmul.f32 %v656, 0.1875
        %v662 = vadd.f32 %v641, %v657
        %v663 = vadd.f32 %v642, %v658
        %v664 = vadd.f32 %v643, %v659
        %v665 = vadd.f32 %v644, %v660
        %v666 = vadd.f32 %v645, %v661
        %v667 = vrot.slane %v571, 2
        %v668 = vrot.slane %v572, 2
        %v669 = vrot.slane %v573, 2
        %v670 = vrot.slane %v574, 2
        %v671 = vrot.slane %v575, 2
        %vm672 = vcmp.lt.s32.totalorder %v587, 6
        %v673 = vsel %vm672, %v670, %v671
        %v674 = vsel %vm672, %v669, %v670
        %v675 = vsel %vm672, %v668, %v669
        %v676 = vsel %vm672, %v667, %v668
        %v677 = vsel %vm672, %v671, %v667
        %v678 = vmul.f32 %v676, 0.125
        %v679 = vmul.f32 %v675, 0.125
        %v680 = vmul.f32 %v674, 0.125
        %v681 = vmul.f32 %v673, 0.125
        %v682 = vmul.f32 %v677, 0.125
        %v683 = vadd.f32 %v662, %v678
        %v684 = vadd.f32 %v663, %v679
        %v685 = vadd.f32 %v664, %v680
        %v686 = vadd.f32 %v665, %v681
        %v687 = vadd.f32 %v666, %v682
        %v688 = vrot.slane %v571, 3
        %v689 = vrot.slane %v572, 3
        %v690 = vrot.slane %v573, 3
        %v691 = vrot.slane %v574, 3
        %v692 = vrot.slane %v575, 3
        %vm693 = vcmp.lt.s32.totalorder %v587, 5
        %v694 = vsel %vm693, %v691, %v692
        %v695 = vsel %vm693, %v690, %v691
        %v696 = vsel %vm693, %v689, %v690
        %v697 = vsel %vm693, %v688, %v689
        %v698 = vsel %vm693, %v692, %v688
        %v699 = vmul.f32 %v697, 0.0625
        %v700 = vmul.f32 %v696, 0.0625
        %v701 = vmul.f32 %v695, 0.0625
        %v702 = vmul.f32 %v694, 0.0625
        %v703 = vmul.f32 %v698, 0.0625
        %v704 = vadd.f32 %v683, %v699
        %v705 = vadd.f32 %v684, %v700
        %v706 = vadd.f32 %v685, %v701
        %v707 = vadd.f32 %v686, %v702
        %v708 = vadd.f32 %v687, %v703
        %v709 = vsub.f32 1.0, %v704
        %v710 = vsub.f32 1.0, %v705
        %v711 = vsub.f32 1.0, %v706
        %v712 = vsub.f32 1.0, %v707
        %v713 = vsub.f32 1.0, %v708
        %v714 = vmul.f32 %v293, %v709
        %v715 = vmul.f32 %v294, %v710
        %v716 = vmul.f32 %v295, %v711
        %v717 = vmul.f32 %v296, %v712
        %v718 = vmul.f32 %v297, %v713
        %719 = vst [vmem:[%s275] sm:$0xff] %v714
        %720 = vst [vmem:[%s275 + $0x8] sm:$0xff] %v715
        %721 = vst [vmem:[%s275 + $0x10] sm:$0xff] %v716
        %722 = vst [vmem:[%s275 + $0x18] sm:$0xff] %v717
        %723 = vst [vmem:[%s275 + $0x20] sm:$0xff] %v718
        %v724 = vmul.f32 %v298, %v709
        %v725 = vmul.f32 %v299, %v710
        %v726 = vmul.f32 %v300, %v711
        %v727 = vmul.f32 %v301, %v712
        %v728 = vmul.f32 %v302, %v713
        %729 = vst [vmem:[%s282] sm:$0xff] %v724
        %730 = vst [vmem:[%s282 + $0x8] sm:$0xff] %v725
        %731 = vst [vmem:[%s282 + $0x10] sm:$0xff] %v726
        %732 = vst [vmem:[%s282 + $0x18] sm:$0xff] %v727
        %733 = vst [vmem:[%s282 + $0x20] sm:$0xff] %v728
        %s734 = sand.u32 %s114, 1
        %s735 = scalar_lea.sflag [#allocation4], %s734
        %s736 = sand.u32 %s114, 1
        %s737 = smul.addr %s736, 40
        %s738 = scalar_lea.vmem [#allocation7], %s737
        %s739 = sand.u32 %s140, 1
        %s740 = scalar_lea.sflag [#allocation9], %s739
        %s741 = sand.u32 %s140, 1
        %s742 = smul.addr %s741, 40
        %s743 = scalar_lea.vmem [#allocation8], %s742
        // Predicated region
        $region41: #{tpu_custom_call.1} parent=31 // pred_check
          %p744 = pneg %p124
        $region42: #{tpu_custom_call.1} parent=31 // pred_check_branch
          %746 = sbr.rel (%p744) target = $region44
        $region43: #{tpu_custom_call.1} parent=31 // pred_region
          %s747 = smul.u32 5, %s28
          %s749 = ssub.s32 640, 640
          %750 = vsyncadd %s735, %s749
          %s751 = smul.addr %s747, 128
          %s752 = scalar_lea.hbm %s3, %s751
          %s753 = sshll.u32 %s738, 4
          %s754 = int_to_ptr.vmem [resolvable:$true] %s753
          %759 = dma.vmem_to_hbm [thread:$0]  %s754, 640, %s752, %s735, 128, 128, 8
        $region44: #{tpu_custom_call.1} parent=31 // pred_fallthru
          _
        // Predicated region
        $region45: #{tpu_custom_call.1} parent=31 // pred_check
          %p760 = pneg %p150
        $region46: #{tpu_custom_call.1} parent=31 // pred_check_branch
          %762 = sbr.rel (%p760) target = $region48
        $region47: #{tpu_custom_call.1} parent=31 // pred_region
          %s763 = smul.u32 5, %s28
          %s765 = ssub.s32 640, 640
          %766 = vsyncadd %s740, %s765
          %s767 = smul.addr %s763, 128
          %s768 = scalar_lea.hbm %s4, %s767
          %s769 = sshll.u32 %s743, 4
          %s770 = int_to_ptr.vmem [resolvable:$true] %s769
          %775 = dma.vmem_to_hbm [thread:$0]  %s770, 640, %s768, %s740, 128, 128, 8
        $region48: #{tpu_custom_call.1} parent=31 // pred_fallthru
          _
      $region32: #{tpu_custom_call.1} parent=5 // pred_fallthru
        _
      %p776 = scmp.le.s32.totalorder 2, %s23
      // Predicated region
      $region49: #{tpu_custom_call.1} parent=5 // pred_check
        %p777 = pneg %p776
      $region50: #{tpu_custom_call.1} parent=5 // pred_check_branch
        %779 = sbr.rel (%p777) target = $region52
      $region51: #{tpu_custom_call.1} parent=5 // pred_region
        %s780 = ssub.s32 %s23, 2
        // Predicated region
        $region53: #{tpu_custom_call.1} parent=51 // pred_check
          %p781 = pneg %p130
        $region54: #{tpu_custom_call.1} parent=51 // pred_check_branch
          %783 = sbr.rel (%p781) target = $region56
        $region55: #{tpu_custom_call.1} parent=51 // pred_region
          %s784 = sand.u32 %s115, 1
          %s785 = scalar_lea.sflag [#allocation4], %s784
          %s786 = sand.u32 %s115, 1
          %s787 = smul.addr %s786, 40
          %s788 = scalar_lea.vmem [#allocation7], %s787
          %789 = dma.done %s785, 640
        $region56: #{tpu_custom_call.1} parent=51 // pred_fallthru
          _
        // Predicated region
        $region57: #{tpu_custom_call.1} parent=51 // pred_check
          %p790 = pneg %p156
        $region58: #{tpu_custom_call.1} parent=51 // pred_check_branch
          %792 = sbr.rel (%p790) target = $region60
        $region59: #{tpu_custom_call.1} parent=51 // pred_region
          %s793 = sand.u32 %s141, 1
          %s794 = scalar_lea.sflag [#allocation9], %s793
          %s795 = sand.u32 %s141, 1
          %s796 = smul.addr %s795, 40
          %s797 = scalar_lea.vmem [#allocation8], %s796
          %798 = dma.done %s794, 640
        $region60: #{tpu_custom_call.1} parent=51 // pred_fallthru
          _
      $region52: #{tpu_custom_call.1} parent=5 // pred_fallthru
        _
    $region6: #{tpu_custom_call.1} parent=1 // loop_footer
      %s27 = sadd.s32 1, %s23
    $region7: #{tpu_custom_call.1} parent=1 // loop_footer_branch
      %22 = sbr.rel target = $region3
    $region8: #{tpu_custom_call.1} parent=1 // loop_exit
      _
    %799 = vsyncpa [#allocation3], 1
    %s800 = scalar_lea.sflag [#allocation3], 1
    %801 = vsyncpa %s800, 1
    %802 = vsyncpa [#allocation6], 1
    %s803 = scalar_lea.sflag [#allocation6], 1
    %804 = vsyncpa %s803, 1
    %805 = vsyncpa [#allocation4], 1
    %s806 = scalar_lea.sflag [#allocation4], 1
    %807 = vsyncpa %s806, 1
    %808 = vsyncpa [#allocation9], 1
    %s809 = scalar_lea.sflag [#allocation9], 1
    %810 = vsyncpa %s809, 1

</llo_original>
